<compile_context>
chip_gen: v5e
topology: v5e:2x2
jax: 0.10.0
libtpu: 0.0.40
codegen_flags: <defaults>
</compile_context>

<pallas_src>
import functools

import jax
import jax.numpy as jnp
from jax.experimental import pallas as pl
from jax.experimental.pallas import tpu as pltpu


def _mlp_kernel(x_ref, w1_ref, b1_ref, w2_ref, b2_ref, w3_ref, b3_ref,
                w4_ref, b4_ref, o_ref):
    """Fused 4x (Linear + ReLU): bf16 MXU matmuls, f32 accumulate / bias / ReLU."""
    # Cast the f32 batch tile to bf16 in-kernel (hidden under the MXU).
    h = x_ref[...].astype(jnp.bfloat16)

    h = jnp.dot(h, w1_ref[...], preferred_element_type=jnp.float32) + b1_ref[...]
    h = jnp.maximum(h, 0.0).astype(jnp.bfloat16)

    h = jnp.dot(h, w2_ref[...], preferred_element_type=jnp.float32) + b2_ref[...]
    h = jnp.maximum(h, 0.0).astype(jnp.bfloat16)

    h = jnp.dot(h, w3_ref[...], preferred_element_type=jnp.float32) + b3_ref[...]
    h = jnp.maximum(h, 0.0).astype(jnp.bfloat16)

    h = jnp.dot(h, w4_ref[...], preferred_element_type=jnp.float32) + b4_ref[...]
    h = jnp.maximum(h, 0.0)

    o_ref[...] = h.astype(o_ref.dtype)


def prepare_params(params):
    """One-time parameter preprocessing: bf16 weights, 2-D f32 biases.

    Call once (outside the hot loop) so the per-call path dispatches no small
    eager cast/reshape ops.
    """
    prepped = {}
    for l in range(1, 5):
        prepped[f"w{l}"] = params[f"w{l}"].astype(jnp.bfloat16)
        prepped[f"b{l}"] = params[f"b{l}"].reshape(1, -1).astype(jnp.float32)
    return prepped


@functools.partial(jax.jit, static_argnames=("batch_tile",))
def network_light_recipe(x, prepped, *, batch_tile=512):
    """Run the fused MLP.

    x: (B, input_size) float32.
    prepped: output of prepare_params (w1..w4 bf16 (in,out), b1..b4 f32 (1,out)).
    Returns (B, output_size) float32.
    """
    B, d_in = x.shape
    d_h1 = prepped["w1"].shape[1]           # 256
    d_h2 = prepped["w2"].shape[1]           # 512
    d_h3 = prepped["w3"].shape[1]           # 256
    d_out = prepped["w4"].shape[1]

    # Batch tile: large (amortizes per-grid-step overhead), clamped to B.
    tb = min(batch_tile, B)
    # Ensure >= 2 grid steps when the whole batch fits one tile and B is big
    # enough, so the "parallel" axis can shard across v7x's two TensorCores.
    if B <= tb and B >= 256:
        tb = ((pl.cdiv(B, 2) + 127) // 128) * 128
    grid = (pl.cdiv(B, tb),)

    def resident(shape):
        # Whole array, same block every grid step -> stays resident in VMEM.
        return pl.BlockSpec(shape, lambda i: tuple(0 for _ in shape))

    flops = 2 * B * (d_in * d_h1 + d_h1 * d_h2 + d_h2 * d_h3 + d_h3 * d_out)
    bytes_accessed = (
        B * d_in * 4                                            # x (f32)
        + sum(int(prepped[f"w{l}"].size) * 2 for l in range(1, 5))  # bf16 weights
        + sum(int(prepped[f"b{l}"].size) * 4 for l in range(1, 5))  # f32 biases
        + B * d_out * 4                                         # output (f32)
    )

    out = pl.pallas_call(
        _mlp_kernel,
        out_shape=jax.ShapeDtypeStruct((B, d_out), jnp.float32),
        grid_spec=pltpu.PrefetchScalarGridSpec(
            num_scalar_prefetch=0,
            grid=grid,
            in_specs=[
                pl.BlockSpec((tb, d_in), lambda i: (i, 0)),   # x tile over batch
                resident(prepped["w1"].shape), resident(prepped["b1"].shape),
                resident(prepped["w2"].shape), resident(prepped["b2"].shape),
                resident(prepped["w3"].shape), resident(prepped["b3"].shape),
                resident(prepped["w4"].shape), resident(prepped["b4"].shape),
            ],
            # Unpadded output block: last dim == full array dim (legal); avoids
            # a padded-f32 writeback plus a separate slice pass.
            out_specs=pl.BlockSpec((tb, d_out), lambda i: (i, 0)),
        ),
        compiler_params=pltpu.CompilerParams(
            dimension_semantics=("parallel",),
            vmem_limit_bytes=32 * 1024 * 1024,
        ),
        cost_estimate=pl.CostEstimate(
            flops=flops, transcendentals=0, bytes_accessed=bytes_accessed),
    )(x, prepped["w1"], prepped["b1"], prepped["w2"], prepped["b2"],
      prepped["w3"], prepped["b3"], prepped["w4"], prepped["b4"])

    return out


def init_params(key, input_size, output_size):
    """Deterministic synthetic parameters (shapes match the PyTorch module)."""
    dims = [(input_size, 256), (256, 512), (512, 256), (256, output_size)]
    params = {}
    keys = jax.random.split(key, 2 * len(dims))
    for idx, (fan_in, fan_out) in enumerate(dims):
        scale = 1.0 / jnp.sqrt(jnp.float32(fan_in))
        params[f"w{idx + 1}"] = jax.random.uniform(
            keys[2 * idx], (fan_in, fan_out),
            minval=-scale, maxval=scale, dtype=jnp.float32)
        params[f"b{idx + 1}"] = jax.random.uniform(
            keys[2 * idx + 1], (fan_out,),
            minval=-scale, maxval=scale, dtype=jnp.float32)
    return params


def reference_forward(x, params):
    """Reference in the kernel's precision contract (bf16 matmul, f32 acc)."""
    h = x.astype(jnp.bfloat16)
    for l in range(1, 5):
        w = params[f"w{l}"].astype(jnp.bfloat16)
        b = params[f"b{l}"].astype(jnp.float32)
        h = jnp.maximum(
            jnp.dot(h, w, preferred_element_type=jnp.float32) + b, 0.0)
        if l < 4:
            h = h.astype(jnp.bfloat16)
    return h


if __name__ == "__main__":
    key = jax.random.PRNGKey(0)
    k_param, k_x = jax.random.split(key)

    batch, input_size, output_size = 8, 32, 16
    params = init_params(k_param, input_size, output_size)
    x = jax.random.normal(k_x, (batch, input_size), dtype=jnp.float32)

    prepped = prepare_params(params)           # one-time preprocessing
    out = network_light_recipe(x, prepped)
    out = jax.block_until_ready(out)

    ref = reference_forward(x, params)
    assert out.shape == (batch, output_size), out.shape
    assert jnp.allclose(out, ref, atol=1e-3, rtol=1e-3), "mismatch vs reference"

    print("KERNEL_OK")
</pallas_src>

<mosaic_0001>
module attributes {stable_mosaic.version = 11 : i64} {
  func.func @_mlp_kernel(%arg0: i32, %arg1: memref<8x32xf32, #tpu.memory_space<vmem>>, %arg2: memref<32x256xbf16, #tpu.memory_space<vmem>>, %arg3: memref<1x256xf32, #tpu.memory_space<vmem>>, %arg4: memref<256x512xbf16, #tpu.memory_space<vmem>>, %arg5: memref<1x512xf32, #tpu.memory_space<vmem>>, %arg6: memref<512x256xbf16, #tpu.memory_space<vmem>>, %arg7: memref<1x256xf32, #tpu.memory_space<vmem>>, %arg8: memref<256x16xbf16, #tpu.memory_space<vmem>>, %arg9: memref<1x16xf32, #tpu.memory_space<vmem>>, %arg10: memref<8x16xf32, #tpu.memory_space<vmem>>) attributes {dimension_semantics = [#tpu.dimension_semantics<parallel>], iteration_bounds = array<i64: 1>, scalar_prefetch = 0 : i64, scratch_operands = 0 : i64, tpu.core_type = #tpu.core_type<tc>, window_params = [{transform_indices = @transform_0, window_bounds = array<i64: 8, 32>}, {pipeline_mode = #tpu.pipeline_mode<synchronous>, transform_indices = @transform_1, window_bounds = array<i64: 32, 256>}, {pipeline_mode = #tpu.pipeline_mode<synchronous>, transform_indices = @transform_2, window_bounds = array<i64: 1, 256>}, {pipeline_mode = #tpu.pipeline_mode<synchronous>, transform_indices = @transform_3, window_bounds = array<i64: 256, 512>}, {pipeline_mode = #tpu.pipeline_mode<synchronous>, transform_indices = @transform_4, window_bounds = array<i64: 1, 512>}, {pipeline_mode = #tpu.pipeline_mode<synchronous>, transform_indices = @transform_5, window_bounds = array<i64: 512, 256>}, {pipeline_mode = #tpu.pipeline_mode<synchronous>, transform_indices = @transform_6, window_bounds = array<i64: 1, 256>}, {pipeline_mode = #tpu.pipeline_mode<synchronous>, transform_indices = @transform_7, window_bounds = array<i64: 256, 16>}, {pipeline_mode = #tpu.pipeline_mode<synchronous>, transform_indices = @transform_8, window_bounds = array<i64: 1, 16>}, {transform_indices = @transform_9, window_bounds = array<i64: 8, 16>}]} {
    %c0 = arith.constant 0 : index
    %c0_0 = arith.constant 0 : index
    %0 = vector.load %arg1[%c0, %c0_0] : memref<8x32xf32, #tpu.memory_space<vmem>>, vector<8x32xf32>
    %1 = arith.truncf %0 : vector<8x32xf32> to vector<8x32xbf16>
    %c0_1 = arith.constant 0 : index
    %c0_2 = arith.constant 0 : index
    %2 = vector.load %arg2[%c0_1, %c0_2] : memref<32x256xbf16, #tpu.memory_space<vmem>>, vector<32x256xbf16>
    %cst = arith.constant dense<0.000000e+00> : vector<8x256xf32>
    %3 = tpu.matmul %1, %2, %cst {dimension_numbers = #tpu.dot_dimension_numbers<[1], [0], [0], [1], [0, 0, 1, 1], [], []>} : vector<8x32xbf16>, vector<32x256xbf16>, vector<8x256xf32> -> vector<8x256xf32>
    %c0_3 = arith.constant 0 : index
    %c0_4 = arith.constant 0 : index
    %4 = vector.load %arg3[%c0_3, %c0_4] : memref<1x256xf32, #tpu.memory_space<vmem>>, vector<1x256xf32>
    %5 = vector.broadcast %4 : vector<1x256xf32> to vector<8x256xf32>
    %6 = arith.addf %3, %5 : vector<8x256xf32>
    %cst_5 = arith.constant 0.000000e+00 : f32
    %7 = vector.broadcast %cst_5 : f32 to vector<8x256xf32>
    %8 = arith.maximumf %6, %7 : vector<8x256xf32>
    %9 = arith.truncf %8 : vector<8x256xf32> to vector<8x256xbf16>
    %c0_6 = arith.constant 0 : index
    %c0_7 = arith.constant 0 : index
    %10 = vector.load %arg4[%c0_6, %c0_7] : memref<256x512xbf16, #tpu.memory_space<vmem>>, vector<256x512xbf16>
    %cst_8 = arith.constant dense<0.000000e+00> : vector<8x512xf32>
    %11 = tpu.matmul %9, %10, %cst_8 {dimension_numbers = #tpu.dot_dimension_numbers<[1], [0], [0], [1], [0, 0, 1, 1], [], []>} : vector<8x256xbf16>, vector<256x512xbf16>, vector<8x512xf32> -> vector<8x512xf32>
    %c0_9 = arith.constant 0 : index
    %c0_10 = arith.constant 0 : index
    %12 = vector.load %arg5[%c0_9, %c0_10] : memref<1x512xf32, #tpu.memory_space<vmem>>, vector<1x512xf32>
    %13 = vector.broadcast %12 : vector<1x512xf32> to vector<8x512xf32>
    %14 = arith.addf %11, %13 : vector<8x512xf32>
    %cst_11 = arith.constant 0.000000e+00 : f32
    %15 = vector.broadcast %cst_11 : f32 to vector<8x512xf32>
    %16 = arith.maximumf %14, %15 : vector<8x512xf32>
    %17 = arith.truncf %16 : vector<8x512xf32> to vector<8x512xbf16>
    %c0_12 = arith.constant 0 : index
    %c0_13 = arith.constant 0 : index
    %18 = vector.load %arg6[%c0_12, %c0_13] : memref<512x256xbf16, #tpu.memory_space<vmem>>, vector<512x256xbf16>
    %cst_14 = arith.constant dense<0.000000e+00> : vector<8x256xf32>
    %19 = tpu.matmul %17, %18, %cst_14 {dimension_numbers = #tpu.dot_dimension_numbers<[1], [0], [0], [1], [0, 0, 1, 1], [], []>} : vector<8x512xbf16>, vector<512x256xbf16>, vector<8x256xf32> -> vector<8x256xf32>
    %c0_15 = arith.constant 0 : index
    %c0_16 = arith.constant 0 : index
    %20 = vector.load %arg7[%c0_15, %c0_16] : memref<1x256xf32, #tpu.memory_space<vmem>>, vector<1x256xf32>
    %21 = vector.broadcast %20 : vector<1x256xf32> to vector<8x256xf32>
    %22 = arith.addf %19, %21 : vector<8x256xf32>
    %cst_17 = arith.constant 0.000000e+00 : f32
    %23 = vector.broadcast %cst_17 : f32 to vector<8x256xf32>
    %24 = arith.maximumf %22, %23 : vector<8x256xf32>
    %25 = arith.truncf %24 : vector<8x256xf32> to vector<8x256xbf16>
    %c0_18 = arith.constant 0 : index
    %c0_19 = arith.constant 0 : index
    %26 = vector.load %arg8[%c0_18, %c0_19] : memref<256x16xbf16, #tpu.memory_space<vmem>>, vector<256x16xbf16>
    %cst_20 = arith.constant dense<0.000000e+00> : vector<8x16xf32>
    %27 = tpu.matmul %25, %26, %cst_20 {dimension_numbers = #tpu.dot_dimension_numbers<[1], [0], [0], [1], [0, 0, 1, 1], [], []>} : vector<8x256xbf16>, vector<256x16xbf16>, vector<8x16xf32> -> vector<8x16xf32>
    %c0_21 = arith.constant 0 : index
    %c0_22 = arith.constant 0 : index
    %28 = vector.load %arg9[%c0_21, %c0_22] : memref<1x16xf32, #tpu.memory_space<vmem>>, vector<1x16xf32>
    %29 = vector.broadcast %28 : vector<1x16xf32> to vector<8x16xf32>
    %30 = arith.addf %27, %29 : vector<8x16xf32>
    %cst_23 = arith.constant 0.000000e+00 : f32
    %31 = vector.broadcast %cst_23 : f32 to vector<8x16xf32>
    %32 = arith.maximumf %30, %31 : vector<8x16xf32>
    %c0_24 = arith.constant 0 : index
    %c0_25 = arith.constant 0 : index
    %33 = vector.load %arg10[%c0_24, %c0_25] : memref<8x16xf32, #tpu.memory_space<vmem>>, vector<8x16xf32>
    tpu.vector_store %arg10[%c0_24, %c0_25], %32 {strides = array<i32>} : memref<8x16xf32, #tpu.memory_space<vmem>>, vector<8x16xf32>,
    return
  }
  func.func @transform_0(%arg0: i32) -> (i32, i32) {
    %c0_i32 = arith.constant 0 : i32
    %c0_i32_0 = arith.constant 0 : i32
    return %arg0, %c0_i32 : i32, i32
  }
  func.func @transform_1(%arg0: i32) -> (i32, i32) {
    %c0_i32 = arith.constant 0 : i32
    %c0_i32_0 = arith.constant 0 : i32
    %c0_i32_1 = arith.constant 0 : i32
    return %c0_i32, %c0_i32_0 : i32, i32
  }
  func.func @transform_2(%arg0: i32) -> (i32, i32) {
    %c0_i32 = arith.constant 0 : i32
    %c0_i32_0 = arith.constant 0 : i32
    %c0_i32_1 = arith.constant 0 : i32
    return %c0_i32, %c0_i32_0 : i32, i32
  }
  func.func @transform_3(%arg0: i32) -> (i32, i32) {
    %c0_i32 = arith.constant 0 : i32
    %c0_i32_0 = arith.constant 0 : i32
    %c0_i32_1 = arith.constant 0 : i32
    return %c0_i32, %c0_i32_0 : i32, i32
  }
  func.func @transform_4(%arg0: i32) -> (i32, i32) {
    %c0_i32 = arith.constant 0 : i32
    %c0_i32_0 = arith.constant 0 : i32
    %c0_i32_1 = arith.constant 0 : i32
    return %c0_i32, %c0_i32_0 : i32, i32
  }
  func.func @transform_5(%arg0: i32) -> (i32, i32) {
    %c0_i32 = arith.constant 0 : i32
    %c0_i32_0 = arith.constant 0 : i32
    %c0_i32_1 = arith.constant 0 : i32
    return %c0_i32, %c0_i32_0 : i32, i32
  }
  func.func @transform_6(%arg0: i32) -> (i32, i32) {
    %c0_i32 = arith.constant 0 : i32
    %c0_i32_0 = arith.constant 0 : i32
    %c0_i32_1 = arith.constant 0 : i32
    return %c0_i32, %c0_i32_0 : i32, i32
  }
  func.func @transform_7(%arg0: i32) -> (i32, i32) {
    %c0_i32 = arith.constant 0 : i32
    %c0_i32_0 = arith.constant 0 : i32
    %c0_i32_1 = arith.constant 0 : i32
    return %c0_i32, %c0_i32_0 : i32, i32
  }
  func.func @transform_8(%arg0: i32) -> (i32, i32) {
    %c0_i32 = arith.constant 0 : i32
    %c0_i32_0 = arith.constant 0 : i32
    %c0_i32_1 = arith.constant 0 : i32
    return %c0_i32, %c0_i32_0 : i32, i32
  }
  func.func @transform_9(%arg0: i32) -> (i32, i32) {
    %c0_i32 = arith.constant 0 : i32
    %c0_i32_0 = arith.constant 0 : i32
    return %arg0, %c0_i32 : i32, i32
  }
}

</mosaic_0001>

<llo_original>
// kernel: network_light_recipe.1
$region0: #{network_light_recipe.1}
  #allocation0 [shape = 'u32[]', space=smem, size = 0x4, offset = 0x4, fixed_abs, tag = 'smem constant byte address 0x4 - core index']
  #allocation1 [shape = 'u32[72,128]{1,0:T(1,128)}', space=vmem, size = 0x9000, scoped, tag = 'internal scratch']
  %s0 = inlined_call_operand.vmem [shape: f32[8,32], index: 0, kind: input, shape index: {}]
  %s1 = inlined_call_operand.vmem [shape: bf16[32,256], index: 1, kind: input, shape index: {}]
  %s2 = inlined_call_operand.vmem [shape: f32[1,256], index: 2, kind: input, shape index: {}]
  %s3 = inlined_call_operand.hbm [shape: bf16[256,512], index: 3, kind: input, shape index: {}]
  %s4 = inlined_call_operand.vmem [shape: f32[1,512], index: 4, kind: input, shape index: {}]
  %s5 = inlined_call_operand.hbm [shape: bf16[512,256], index: 5, kind: input, shape index: {}]
  %s6 = inlined_call_operand.vmem [shape: f32[1,256], index: 6, kind: input, shape index: {}]
  %s7 = inlined_call_operand.vmem [shape: bf16[256,16], index: 7, kind: input, shape index: {}]
  %s8 = inlined_call_operand.vmem [shape: f32[1,16], index: 8, kind: input, shape index: {}]
  %s9 = inlined_call_operand.hbm [shape: f32[8,16], index: 9, kind: output, shape index: {}]
  %s10 = sld [smem:[#allocation0]]
  $region54: #{network_light_recipe.1} parent=0
    _
  %s12 = ssub.s32 1, %s10
  %s13 = scalar_select 0, %s12, %s10
  $region1: #{network_light_recipe.1} parent=0
    #allocation2 [shape = 'u8[262144]{0}', space=vmem, size = 0x40000, scoped, tag = 'input window, operand 3, single buffered']
    #allocation3 [shape = 's32[1]{0}', space=sflag, size = 0x4, scoped, tag = 'scoped memory for network_light_recipe.1']
    #allocation4 [shape = 's32[1]{0}', space=sflag, size = 0x4, scoped, tag = 'scoped memory for network_light_recipe.1']
    #allocation5 [shape = 'u8[262144]{0}', space=vmem, size = 0x40000, scoped, tag = 'input window, operand 5, single buffered']
    #allocation6 [shape = 's32[1]{0}', space=sflag, size = 0x4, scoped, tag = 'scoped memory for network_light_recipe.1']
    #allocation7 [shape = 'u8[4096]{0}', space=vmem, size = 0x1000, scoped, tag = 'output window, operand 0, single buffered']
    %14 = vsyncpa [#allocation3], 0
    %15 = vsyncpa [#allocation6], 0
    %16 = vsyncpa [#allocation4], 0
    // Predicated region
    $region2: #{network_light_recipe.1} parent=1 // pred_check
      _
    $region3: #{network_light_recipe.1} parent=1 // pred_check_branch
      %18 = sbr.rel (0) target = $region5
    $region4: #{network_light_recipe.1} parent=1 // pred_region
      _
    $region5: #{network_light_recipe.1} parent=1 // pred_fallthru
      _
    // Predicated region
    $region6: #{network_light_recipe.1} parent=1 // pred_check
      _
    $region7: #{network_light_recipe.1} parent=1 // pred_check_branch
      %20 = sbr.rel (0) target = $region9
    $region8: #{network_light_recipe.1} parent=1 // pred_region
      _
    $region9: #{network_light_recipe.1} parent=1 // pred_fallthru
      _
    // Predicated region
    $region10: #{network_light_recipe.1} parent=1 // pred_check
      _
    $region11: #{network_light_recipe.1} parent=1 // pred_check_branch
      %22 = sbr.rel (0) target = $region13
    $region12: #{network_light_recipe.1} parent=1 // pred_region
      _
    $region13: #{network_light_recipe.1} parent=1 // pred_fallthru
      _
    // Predicated region
    $region14: #{network_light_recipe.1} parent=1 // pred_check
      _
    $region15: #{network_light_recipe.1} parent=1 // pred_check_branch
      %24 = sbr.rel (0) target = $region17
    $region16: #{network_light_recipe.1} parent=1 // pred_region
      %26 = vsyncadd [#allocation3], 0
      %s27 = sshll.u32 %s3, 4
      %s28 = int_to_ptr.hbm [resolvable:$true] %s27
      %s29 = sshll.u32 [#allocation2], 4
      %s30 = int_to_ptr.vmem [resolvable:$true] %s29
      %35 = dma.hbm_to_vmem [thread:$0]  %s28, 8192, %s30, [#allocation3], 256, 256, 16
    $region17: #{network_light_recipe.1} parent=1 // pred_fallthru
      _
    // Predicated region
    $region18: #{network_light_recipe.1} parent=1 // pred_check
      _
    $region19: #{network_light_recipe.1} parent=1 // pred_check_branch
      %37 = sbr.rel (0) target = $region21
    $region20: #{network_light_recipe.1} parent=1 // pred_region
      _
    $region21: #{network_light_recipe.1} parent=1 // pred_fallthru
      _
    // Predicated region
    $region22: #{network_light_recipe.1} parent=1 // pred_check
      _
    $region23: #{network_light_recipe.1} parent=1 // pred_check_branch
      %39 = sbr.rel (0) target = $region25
    $region24: #{network_light_recipe.1} parent=1 // pred_region
      %41 = vsyncadd [#allocation6], 0
      %s42 = sshll.u32 %s5, 4
      %s43 = int_to_ptr.hbm [resolvable:$true] %s42
      %s44 = sshll.u32 [#allocation5], 4
      %s45 = int_to_ptr.vmem [resolvable:$true] %s44
      %50 = dma.hbm_to_vmem [thread:$0]  %s43, 8192, %s45, [#allocation6], 128, 128, 8
    $region25: #{network_light_recipe.1} parent=1 // pred_fallthru
      _
    // Predicated region
    $region26: #{network_light_recipe.1} parent=1 // pred_check
      _
    $region27: #{network_light_recipe.1} parent=1 // pred_check_branch
      %52 = sbr.rel (0) target = $region29
    $region28: #{network_light_recipe.1} parent=1 // pred_region
      _
    $region29: #{network_light_recipe.1} parent=1 // pred_fallthru
      _
    // Predicated region
    $region30: #{network_light_recipe.1} parent=1 // pred_check
      _
    $region31: #{network_light_recipe.1} parent=1 // pred_check_branch
      %54 = sbr.rel (0) target = $region33
    $region32: #{network_light_recipe.1} parent=1 // pred_region
      _
    $region33: #{network_light_recipe.1} parent=1 // pred_fallthru
      _
    // Predicated region
    $region34: #{network_light_recipe.1} parent=1 // pred_check
      _
    $region35: #{network_light_recipe.1} parent=1 // pred_check_branch
      %56 = sbr.rel (0) target = $region37
    $region36: #{network_light_recipe.1} parent=1 // pred_region
      _
    $region37: #{network_light_recipe.1} parent=1 // pred_fallthru
      _
    // Predicated region
    $region38: #{network_light_recipe.1} parent=1 // pred_check
      _
    $region39: #{network_light_recipe.1} parent=1 // pred_check_branch
      %58 = sbr.rel (0) target = $region41
    $region40: #{network_light_recipe.1} parent=1 // pred_region
      %60 = dma.done [#allocation3], 8192
    $region41: #{network_light_recipe.1} parent=1 // pred_fallthru
      _
    // Predicated region
    $region42: #{network_light_recipe.1} parent=1 // pred_check
      _
    $region43: #{network_light_recipe.1} parent=1 // pred_check_branch
      %62 = sbr.rel (0) target = $region45
    $region44: #{network_light_recipe.1} parent=1 // pred_region
      %64 = dma.done [#allocation6], 8192
    $region45: #{network_light_recipe.1} parent=1 // pred_fallthru
      _
    %v66 = vld [vmem:[%s0] sm:$0xff]
    %v67 = vpack.c.bf16 %v66, %v66
    %v68 = vld [vmem:[%s1] sm:$0xff]
    %v69 = vld [vmem:[%s1 + $0x8] sm:$0xff]
    %v70 = vld [vmem:[%s1 + $0x10] sm:$0xff]
    %v71 = vld [vmem:[%s1 + $0x18] sm:$0xff]
    %v72 = vld [vmem:[%s2] sm:$0x3]
    %v74 = vperm.slane %v72, 0
    %v75 = vperm.slane %v72, 1
    %v82 = vunpack.c.l.b16 %v68
    %v83 = vunpack.c.h.b16 %v68
    %v84 = vunpack.c.l.b16 %v69
    %v85 = vunpack.c.h.b16 %v69
    %v86 = vunpack.c.l.b16 %v70
    %v87 = vunpack.c.h.b16 %v70
    %v88 = vunpack.c.l.b16 %v71
    %v89 = vunpack.c.h.b16 %v71
    %v90 = vpack.c.b16 %v84, %v82
    %v91 = vpack.c.b16 %v85, %v83
    %v92 = vpack.c.b16 %v88, %v86
    %v93 = vpack.c.b16 %v89, %v87
    %vm98 = vcmask 261120
    %v100 = vsel %vm98, %v67, 0
    %102 = vmatpush.bf16.msra.mxu0 0
    %103 = vmatpush.bf16.msra.mxu0 0
    %104 = vmatpush.bf16.msra.mxu0 0
    %105 = vmatpush.bf16.msra.mxu0 0
    %106 = vmatpush.bf16.msra.mxu0 0
    %107 = vmatpush.bf16.msra.mxu0 0
    %108 = vmatpush.bf16.msra.mxu0 %v92
    %109 = vmatpush.bf16.msra.mxu0 %v90
    %110 = vmatmul.bf16.gmra.mxu0 %v100
    %v111 = vpop.f32.mrf.mxu0
    %v112 = vadd.f32 %v74, %v111
    %v113 = vpop.f32.mrf.mxu0
    %114 = vdwg.mxu0
    %115 = vmatpush.bf16.msra.mxu0 0
    %116 = vmatpush.bf16.msra.mxu0 0
    %117 = vmatpush.bf16.msra.mxu0 0
    %118 = vmatpush.bf16.msra.mxu0 0
    %119 = vmatpush.bf16.msra.mxu0 0
    %120 = vmatpush.bf16.msra.mxu0 0
    %121 = vmatpush.bf16.msra.mxu0 %v93
    %122 = vmatpush.bf16.msra.mxu0 %v91
    %123 = vmatmul.bf16.gmra.mxu0 %v100
    %v124 = vpop.f32.mrf.mxu0
    %v125 = vadd.f32 %v75, %v124
    %v126 = vpop.f32.mrf.mxu0
    %127 = vdwg.mxu0
    %v128 = vmax.f32 %v112, 0.0
    %v129 = vmax.f32 %v125, 0.0
    %v130 = vpack.c.bf16 %v128, %v128
    %v131 = vpack.c.bf16 %v129, %v129
    %v132 = vld [vmem:[#allocation2] sm:$0xff]
    %v133 = vld [vmem:[#allocation2 + $0x8] sm:$0xff]
    %v134 = vld [vmem:[#allocation2 + $0x10] sm:$0xff]
    %v135 = vld [vmem:[#allocation2 + $0x18] sm:$0xff]
    %v136 = vld [vmem:[#allocation2 + $0x20] sm:$0xff]
    %v137 = vld [vmem:[#allocation2 + $0x28] sm:$0xff]
    %v138 = vld [vmem:[#allocation2 + $0x30] sm:$0xff]
    %v139 = vld [vmem:[#allocation2 + $0x38] sm:$0xff]
    %v140 = vld [vmem:[#allocation2 + $0x40] sm:$0xff]
    %v141 = vld [vmem:[#allocation2 + $0x48] sm:$0xff]
    %v142 = vld [vmem:[#allocation2 + $0x50] sm:$0xff]
    %v143 = vld [vmem:[#allocation2 + $0x58] sm:$0xff]
    %v144 = vld [vmem:[#allocation2 + $0x60] sm:$0xff]
    %v145 = vld [vmem:[#allocation2 + $0x68] sm:$0xff]
    %v146 = vld [vmem:[#allocation2 + $0x70] sm:$0xff]
    %v147 = vld [vmem:[#allocation2 + $0x78] sm:$0xff]
    %v148 = vld [vmem:[#allocation2 + $0x80] sm:$0xff]
    %v149 = vld [vmem:[#allocation2 + $0x88] sm:$0xff]
    %v150 = vld [vmem:[#allocation2 + $0x90] sm:$0xff]
    %v151 = vld [vmem:[#allocation2 + $0x98] sm:$0xff]
    %v152 = vld [vmem:[#allocation2 + $0xa0] sm:$0xff]
    %v153 = vld [vmem:[#allocation2 + $0xa8] sm:$0xff]
    %v154 = vld [vmem:[#allocation2 + $0xb0] sm:$0xff]
    %v155 = vld [vmem:[#allocation2 + $0xb8] sm:$0xff]
    %v156 = vld [vmem:[#allocation2 + $0xc0] sm:$0xff]
    %v157 = vld [vmem:[#allocation2 + $0xc8] sm:$0xff]
    %v158 = vld [vmem:[#allocation2 + $0xd0] sm:$0xff]
    %v159 = vld [vmem:[#allocation2 + $0xd8] sm:$0xff]
    %v160 = vld [vmem:[#allocation2 + $0xe0] sm:$0xff]
    %v161 = vld [vmem:[#allocation2 + $0xe8] sm:$0xff]
    %v162 = vld [vmem:[#allocation2 + $0xf0] sm:$0xff]
    %v163 = vld [vmem:[#allocation2 + $0xf8] sm:$0xff]
    %v164 = vld [vmem:[#allocation2 + $0x100] sm:$0xff]
    %v165 = vld [vmem:[#allocation2 + $0x108] sm:$0xff]
    %v166 = vld [vmem:[#allocation2 + $0x110] sm:$0xff]
    %v167 = vld [vmem:[#allocation2 + $0x118] sm:$0xff]
    %v168 = vld [vmem:[#allocation2 + $0x120] sm:$0xff]
    %v169 = vld [vmem:[#allocation2 + $0x128] sm:$0xff]
    %v170 = vld [vmem:[#allocation2 + $0x130] sm:$0xff]
    %v171 = vld [vmem:[#allocation2 + $0x138] sm:$0xff]
    %v172 = vld [vmem:[#allocation2 + $0x140] sm:$0xff]
    %v173 = vld [vmem:[#allocation2 + $0x148] sm:$0xff]
    %v174 = vld [vmem:[#allocation2 + $0x150] sm:$0xff]
    %v175 = vld [vmem:[#allocation2 + $0x158] sm:$0xff]
    %v176 = vld [vmem:[#allocation2 + $0x160] sm:$0xff]
    %v177 = vld [vmem:[#allocation2 + $0x168] sm:$0xff]
    %v178 = vld [vmem:[#allocation2 + $0x170] sm:$0xff]
    %v179 = vld [vmem:[#allocation2 + $0x178] sm:$0xff]
    %v180 = vld [vmem:[#allocation2 + $0x180] sm:$0xff]
    %v181 = vld [vmem:[#allocation2 + $0x188] sm:$0xff]
    %v182 = vld [vmem:[#allocation2 + $0x190] sm:$0xff]
    %v183 = vld [vmem:[#allocation2 + $0x198] sm:$0xff]
    %v184 = vld [vmem:[#allocation2 + $0x1a0] sm:$0xff]
    %v185 = vld [vmem:[#allocation2 + $0x1a8] sm:$0xff]
    %v186 = vld [vmem:[#allocation2 + $0x1b0] sm:$0xff]
    %v187 = vld [vmem:[#allocation2 + $0x1b8] sm:$0xff]
    %v188 = vld [vmem:[#allocation2 + $0x1c0] sm:$0xff]
    %v189 = vld [vmem:[#allocation2 + $0x1c8] sm:$0xff]
    %v190 = vld [vmem:[#allocation2 + $0x1d0] sm:$0xff]
    %v191 = vld [vmem:[#allocation2 + $0x1d8] sm:$0xff]
    %v192 = vld [vmem:[#allocation2 + $0x1e0] sm:$0xff]
    %v193 = vld [vmem:[#allocation2 + $0x1e8] sm:$0xff]
    %v194 = vld [vmem:[#allocation2 + $0x1f0] sm:$0xff]
    %v195 = vld [vmem:[#allocation2 + $0x1f8] sm:$0xff]
    %v196 = vld [vmem:[%s4] sm:$0xf]
    %v198 = vperm.slane %v196, 0
    %v199 = vperm.slane %v196, 1
    %v200 = vperm.slane %v196, 2
    %v201 = vperm.slane %v196, 3
    %v270 = vunpack.c.l.b16 %v132
    %v271 = vunpack.c.h.b16 %v132
    %v272 = vunpack.c.l.b16 %v133
    %v273 = vunpack.c.h.b16 %v133
    %v274 = vunpack.c.l.b16 %v134
    %v275 = vunpack.c.h.b16 %v134
    %v276 = vunpack.c.l.b16 %v135
    %v277 = vunpack.c.h.b16 %v135
    %v278 = vunpack.c.l.b16 %v136
    %v279 = vunpack.c.h.b16 %v136
    %v280 = vunpack.c.l.b16 %v137
    %v281 = vunpack.c.h.b16 %v137
    %v282 = vunpack.c.l.b16 %v138
    %v283 = vunpack.c.h.b16 %v138
    %v284 = vunpack.c.l.b16 %v139
    %v285 = vunpack.c.h.b16 %v139
    %v286 = vunpack.c.l.b16 %v140
    %v287 = vunpack.c.h.b16 %v140
    %v288 = vunpack.c.l.b16 %v141
    %v289 = vunpack.c.h.b16 %v141
    %v290 = vunpack.c.l.b16 %v142
    %v291 = vunpack.c.h.b16 %v142
    %v292 = vunpack.c.l.b16 %v143
    %v293 = vunpack.c.h.b16 %v143
    %v294 = vunpack.c.l.b16 %v144
    %v295 = vunpack.c.h.b16 %v144
    %v296 = vunpack.c.l.b16 %v145
    %v297 = vunpack.c.h.b16 %v145
    %v298 = vunpack.c.l.b16 %v146
    %v299 = vunpack.c.h.b16 %v146
    %v300 = vunpack.c.l.b16 %v147
    %v301 = vunpack.c.h.b16 %v147
    %v302 = vunpack.c.l.b16 %v148
    %v303 = vunpack.c.h.b16 %v148
    %v304 = vunpack.c.l.b16 %v149
    %v305 = vunpack.c.h.b16 %v149
    %v306 = vunpack.c.l.b16 %v150
    %v307 = vunpack.c.h.b16 %v150
    %v308 = vunpack.c.l.b16 %v151
    %v309 = vunpack.c.h.b16 %v151
    %v310 = vunpack.c.l.b16 %v152
    %v311 = vunpack.c.h.b16 %v152
    %v312 = vunpack.c.l.b16 %v153
    %v313 = vunpack.c.h.b16 %v153
    %v314 = vunpack.c.l.b16 %v154
    %v315 = vunpack.c.h.b16 %v154
    %v316 = vunpack.c.l.b16 %v155
    %v317 = vunpack.c.h.b16 %v155
    %v318 = vunpack.c.l.b16 %v156
    %v319 = vunpack.c.h.b16 %v156
    %v320 = vunpack.c.l.b16 %v157
    %v321 = vunpack.c.h.b16 %v157
    %v322 = vunpack.c.l.b16 %v158
    %v323 = vunpack.c.h.b16 %v158
    %v324 = vunpack.c.l.b16 %v159
    %v325 = vunpack.c.h.b16 %v159
    %v326 = vunpack.c.l.b16 %v160
    %v327 = vunpack.c.h.b16 %v160
    %v328 = vunpack.c.l.b16 %v161
    %v329 = vunpack.c.h.b16 %v161
    %v330 = vunpack.c.l.b16 %v162
    %v331 = vunpack.c.h.b16 %v162
    %v332 = vunpack.c.l.b16 %v163
    %v333 = vunpack.c.h.b16 %v163
    %v334 = vunpack.c.l.b16 %v164
    %v335 = vunpack.c.h.b16 %v164
    %v336 = vunpack.c.l.b16 %v165
    %v337 = vunpack.c.h.b16 %v165
    %v338 = vunpack.c.l.b16 %v166
    %v339 = vunpack.c.h.b16 %v166
    %v340 = vunpack.c.l.b16 %v167
    %v341 = vunpack.c.h.b16 %v167
    %v342 = vunpack.c.l.b16 %v168
    %v343 = vunpack.c.h.b16 %v168
    %v344 = vunpack.c.l.b16 %v169
    %v345 = vunpack.c.h.b16 %v169
    %v346 = vunpack.c.l.b16 %v170
    %v347 = vunpack.c.h.b16 %v170
    %v348 = vunpack.c.l.b16 %v171
    %v349 = vunpack.c.h.b16 %v171
    %v350 = vunpack.c.l.b16 %v172
    %v351 = vunpack.c.h.b16 %v172
    %v352 = vunpack.c.l.b16 %v173
    %v353 = vunpack.c.h.b16 %v173
    %v354 = vunpack.c.l.b16 %v174
    %v355 = vunpack.c.h.b16 %v174
    %v356 = vunpack.c.l.b16 %v175
    %v357 = vunpack.c.h.b16 %v175
    %v358 = vunpack.c.l.b16 %v176
    %v359 = vunpack.c.h.b16 %v176
    %v360 = vunpack.c.l.b16 %v177
    %v361 = vunpack.c.h.b16 %v177
    %v362 = vunpack.c.l.b16 %v178
    %v363 = vunpack.c.h.b16 %v178
    %v364 = vunpack.c.l.b16 %v179
    %v365 = vunpack.c.h.b16 %v179
    %v366 = vunpack.c.l.b16 %v180
    %v367 = vunpack.c.h.b16 %v180
    %v368 = vunpack.c.l.b16 %v181
    %v369 = vunpack.c.h.b16 %v181
    %v370 = vunpack.c.l.b16 %v182
    %v371 = vunpack.c.h.b16 %v182
    %v372 = vunpack.c.l.b16 %v183
    %v373 = vunpack.c.h.b16 %v183
    %v374 = vunpack.c.l.b16 %v184
    %v375 = vunpack.c.h.b16 %v184
    %v376 = vunpack.c.l.b16 %v185
    %v377 = vunpack.c.h.b16 %v185
    %v378 = vunpack.c.l.b16 %v186
    %v379 = vunpack.c.h.b16 %v186
    %v380 = vunpack.c.l.b16 %v187
    %v381 = vunpack.c.h.b16 %v187
    %v382 = vunpack.c.l.b16 %v188
    %v383 = vunpack.c.h.b16 %v188
    %v384 = vunpack.c.l.b16 %v189
    %v385 = vunpack.c.h.b16 %v189
    %v386 = vunpack.c.l.b16 %v190
    %v387 = vunpack.c.h.b16 %v190
    %v388 = vunpack.c.l.b16 %v191
    %v389 = vunpack.c.h.b16 %v191
    %v390 = vunpack.c.l.b16 %v192
    %v391 = vunpack.c.h.b16 %v192
    %v392 = vunpack.c.l.b16 %v193
    %v393 = vunpack.c.h.b16 %v193
    %v394 = vunpack.c.l.b16 %v194
    %v395 = vunpack.c.h.b16 %v194
    %v396 = vunpack.c.l.b16 %v195
    %v397 = vunpack.c.h.b16 %v195
    %v398 = vpack.c.b16 %v274, %v270
    %v399 = vpack.c.b16 %v275, %v271
    %v400 = vpack.c.b16 %v276, %v272
    %v401 = vpack.c.b16 %v277, %v273
    %v402 = vpack.c.b16 %v282, %v278
    %v403 = vpack.c.b16 %v283, %v279
    %v404 = vpack.c.b16 %v284, %v280
    %v405 = vpack.c.b16 %v285, %v281
    %v406 = vpack.c.b16 %v290, %v286
    %v407 = vpack.c.b16 %v291, %v287
    %v408 = vpack.c.b16 %v292, %v288
    %v409 = vpack.c.b16 %v293, %v289
    %v410 = vpack.c.b16 %v298, %v294
    %v411 = vpack.c.b16 %v299, %v295
    %v412 = vpack.c.b16 %v300, %v296
    %v413 = vpack.c.b16 %v301, %v297
    %v414 = vpack.c.b16 %v306, %v302
    %v415 = vpack.c.b16 %v307, %v303
    %v416 = vpack.c.b16 %v308, %v304
    %v417 = vpack.c.b16 %v309, %v305
    %v418 = vpack.c.b16 %v314, %v310
    %v419 = vpack.c.b16 %v315, %v311
    %v420 = vpack.c.b16 %v316, %v312
    %v421 = vpack.c.b16 %v317, %v313
    %v422 = vpack.c.b16 %v322, %v318
    %v423 = vpack.c.b16 %v323, %v319
    %v424 = vpack.c.b16 %v324, %v320
    %v425 = vpack.c.b16 %v325, %v321
    %v426 = vpack.c.b16 %v330, %v326
    %v427 = vpack.c.b16 %v331, %v327
    %v428 = vpack.c.b16 %v332, %v328
    %v429 = vpack.c.b16 %v333, %v329
    %v430 = vpack.c.b16 %v338, %v334
    %v431 = vpack.c.b16 %v339, %v335
    %v432 = vpack.c.b16 %v340, %v336
    %v433 = vpack.c.b16 %v341, %v337
    %v434 = vpack.c.b16 %v346, %v342
    %v435 = vpack.c.b16 %v347, %v343
    %v436 = vpack.c.b16 %v348, %v344
    %v437 = vpack.c.b16 %v349, %v345
    %v438 = vpack.c.b16 %v354, %v350
    %v439 = vpack.c.b16 %v355, %v351
    %v440 = vpack.c.b16 %v356, %v352
    %v441 = vpack.c.b16 %v357, %v353
    %v442 = vpack.c.b16 %v362, %v358
    %v443 = vpack.c.b16 %v363, %v359
    %v444 = vpack.c.b16 %v364, %v360
    %v445 = vpack.c.b16 %v365, %v361
    %v446 = vpack.c.b16 %v370, %v366
    %v447 = vpack.c.b16 %v371, %v367
    %v448 = vpack.c.b16 %v372, %v368
    %v449 = vpack.c.b16 %v373, %v369
    %v450 = vpack.c.b16 %v378, %v374
    %v451 = vpack.c.b16 %v379, %v375
    %v452 = vpack.c.b16 %v380, %v376
    %v453 = vpack.c.b16 %v381, %v377
    %v454 = vpack.c.b16 %v386, %v382
    %v455 = vpack.c.b16 %v387, %v383
    %v456 = vpack.c.b16 %v388, %v384
    %v457 = vpack.c.b16 %v389, %v385
    %v458 = vpack.c.b16 %v394, %v390
    %v459 = vpack.c.b16 %v395, %v391
    %v460 = vpack.c.b16 %v396, %v392
    %v461 = vpack.c.b16 %v397, %v393
    %526 = vmatpush.bf16.msra.mxu0 %v426
    %527 = vmatpush.bf16.msra.mxu0 %v422
    %528 = vmatpush.bf16.msra.mxu0 %v418
    %529 = vmatpush.bf16.msra.mxu0 %v414
    %530 = vmatpush.bf16.msra.mxu0 %v410
    %531 = vmatpush.bf16.msra.mxu0 %v406
    %532 = vmatpush.bf16.msra.mxu0 %v402
    %533 = vmatpush.bf16.msra.mxu0 %v398
    %534 = vmatmul.bf16.gmra.mxu0 %v130
    %v535 = vpop.f32.mrf.mxu0
    %v536 = vadd.f32 %v198, %v535
    %v537 = vpop.f32.mrf.mxu0
    %538 = vdwg.mxu0
    %539 = vmatpush.bf16.msra.mxu0 %v458
    %540 = vmatpush.bf16.msra.mxu0 %v454
    %541 = vmatpush.bf16.msra.mxu0 %v450
    %542 = vmatpush.bf16.msra.mxu0 %v446
    %543 = vmatpush.bf16.msra.mxu0 %v442
    %544 = vmatpush.bf16.msra.mxu0 %v438
    %545 = vmatpush.bf16.msra.mxu0 %v434
    %546 = vmatpush.bf16.msra.mxu0 %v430
    %547 = vmatmul.bf16.gmra.mxu0 %v131
    %v548 = vpop.f32.mrf.mxu0
    %v549 = vadd.f32 %v536, %v548
    %v550 = vpop.f32.mrf.mxu0
    %551 = vdwg.mxu0
    %552 = vmatpush.bf16.msra.mxu0 %v427
    %553 = vmatpush.bf16.msra.mxu0 %v423
    %554 = vmatpush.bf16.msra.mxu0 %v419
    %555 = vmatpush.bf16.msra.mxu0 %v415
    %556 = vmatpush.bf16.msra.mxu0 %v411
    %557 = vmatpush.bf16.msra.mxu0 %v407
    %558 = vmatpush.bf16.msra.mxu0 %v403
    %559 = vmatpush.bf16.msra.mxu0 %v399
    %560 = vmatmul.bf16.gmra.mxu0 %v130
    %v561 = vpop.f32.mrf.mxu0
    %v562 = vadd.f32 %v199, %v561
    %v563 = vpop.f32.mrf.mxu0
    %564 = vdwg.mxu0
    %565 = vmatpush.bf16.msra.mxu0 %v459
    %566 = vmatpush.bf16.msra.mxu0 %v455
    %567 = vmatpush.bf16.msra.mxu0 %v451
    %568 = vmatpush.bf16.msra.mxu0 %v447
    %569 = vmatpush.bf16.msra.mxu0 %v443
    %570 = vmatpush.bf16.msra.mxu0 %v439
    %571 = vmatpush.bf16.msra.mxu0 %v435
    %572 = vmatpush.bf16.msra.mxu0 %v431
    %573 = vmatmul.bf16.gmra.mxu0 %v131
    %v574 = vpop.f32.mrf.mxu0
    %v575 = vadd.f32 %v562, %v574
    %v576 = vpop.f32.mrf.mxu0
    %577 = vdwg.mxu0
    %578 = vmatpush.bf16.msra.mxu0 %v428
    %579 = vmatpush.bf16.msra.mxu0 %v424
    %580 = vmatpush.bf16.msra.mxu0 %v420
    %581 = vmatpush.bf16.msra.mxu0 %v416
    %582 = vmatpush.bf16.msra.mxu0 %v412
    %583 = vmatpush.bf16.msra.mxu0 %v408
    %584 = vmatpush.bf16.msra.mxu0 %v404
    %585 = vmatpush.bf16.msra.mxu0 %v400
    %586 = vmatmul.bf16.gmra.mxu0 %v130
    %v587 = vpop.f32.mrf.mxu0
    %v588 = vadd.f32 %v200, %v587
    %v589 = vpop.f32.mrf.mxu0
    %590 = vdwg.mxu0
    %591 = vmatpush.bf16.msra.mxu0 %v460
    %592 = vmatpush.bf16.msra.mxu0 %v456
    %593 = vmatpush.bf16.msra.mxu0 %v452
    %594 = vmatpush.bf16.msra.mxu0 %v448
    %595 = vmatpush.bf16.msra.mxu0 %v444
    %596 = vmatpush.bf16.msra.mxu0 %v440
    %597 = vmatpush.bf16.msra.mxu0 %v436
    %598 = vmatpush.bf16.msra.mxu0 %v432
    %599 = vmatmul.bf16.gmra.mxu0 %v131
    %v600 = vpop.f32.mrf.mxu0
    %v601 = vadd.f32 %v588, %v600
    %v602 = vpop.f32.mrf.mxu0
    %603 = vdwg.mxu0
    %604 = vmatpush.bf16.msra.mxu0 %v429
    %605 = vmatpush.bf16.msra.mxu0 %v425
    %606 = vmatpush.bf16.msra.mxu0 %v421
    %607 = vmatpush.bf16.msra.mxu0 %v417
    %608 = vmatpush.bf16.msra.mxu0 %v413
    %609 = vmatpush.bf16.msra.mxu0 %v409
    %610 = vmatpush.bf16.msra.mxu0 %v405
    %611 = vmatpush.bf16.msra.mxu0 %v401
    %612 = vmatmul.bf16.gmra.mxu0 %v130
    %v613 = vpop.f32.mrf.mxu0
    %v614 = vadd.f32 %v201, %v613
    %v615 = vpop.f32.mrf.mxu0
    %616 = vdwg.mxu0
    %617 = vmatpush.bf16.msra.mxu0 %v461
    %618 = vmatpush.bf16.msra.mxu0 %v457
    %619 = vmatpush.bf16.msra.mxu0 %v453
    %620 = vmatpush.bf16.msra.mxu0 %v449
    %621 = vmatpush.bf16.msra.mxu0 %v445
    %622 = vmatpush.bf16.msra.mxu0 %v441
    %623 = vmatpush.bf16.msra.mxu0 %v437
    %624 = vmatpush.bf16.msra.mxu0 %v433
    %625 = vmatmul.bf16.gmra.mxu0 %v131
    %v626 = vpop.f32.mrf.mxu0
    %v627 = vadd.f32 %v614, %v626
    %v628 = vpop.f32.mrf.mxu0
    %629 = vdwg.mxu0
    %v630 = vmax.f32 %v549, 0.0
    %v631 = vmax.f32 %v575, 0.0
    %v632 = vmax.f32 %v601, 0.0
    %v633 = vmax.f32 %v627, 0.0
    %v634 = vpack.c.bf16 %v630, %v630
    %v635 = vpack.c.bf16 %v631, %v631
    %v636 = vpack.c.bf16 %v632, %v632
    %v637 = vpack.c.bf16 %v633, %v633
    %v638 = vld [vmem:[#allocation5] sm:$0xff]
    %v639 = vld [vmem:[#allocation5 + $0x8] sm:$0xff]
    %v640 = vld [vmem:[#allocation5 + $0x10] sm:$0xff]
    %v641 = vld [vmem:[#allocation5 + $0x18] sm:$0xff]
    %v642 = vld [vmem:[#allocation5 + $0x20] sm:$0xff]
    %v643 = vld [vmem:[#allocation5 + $0x28] sm:$0xff]
    %v644 = vld [vmem:[#allocation5 + $0x30] sm:$0xff]
    %v645 = vld [vmem:[#allocation5 + $0x38] sm:$0xff]
    %v646 = vld [vmem:[#allocation5 + $0x40] sm:$0xff]
    %v647 = vld [vmem:[#allocation5 + $0x48] sm:$0xff]
    %v648 = vld [vmem:[#allocation5 + $0x50] sm:$0xff]
    %v649 = vld [vmem:[#allocation5 + $0x58] sm:$0xff]
    %v650 = vld [vmem:[#allocation5 + $0x60] sm:$0xff]
    %v651 = vld [vmem:[#allocation5 + $0x68] sm:$0xff]
    %v652 = vld [vmem:[#allocation5 + $0x70] sm:$0xff]
    %v653 = vld [vmem:[#allocation5 + $0x78] sm:$0xff]
    %v654 = vld [vmem:[#allocation5 + $0x80] sm:$0xff]
    %v655 = vld [vmem:[#allocation5 + $0x88] sm:$0xff]
    %v656 = vld [vmem:[#allocation5 + $0x90] sm:$0xff]
    %v657 = vld [vmem:[#allocation5 + $0x98] sm:$0xff]
    %v658 = vld [vmem:[#allocation5 + $0xa0] sm:$0xff]
    %v659 = vld [vmem:[#allocation5 + $0xa8] sm:$0xff]
    %v660 = vld [vmem:[#allocation5 + $0xb0] sm:$0xff]
    %v661 = vld [vmem:[#allocation5 + $0xb8] sm:$0xff]
    %v662 = vld [vmem:[#allocation5 + $0xc0] sm:$0xff]
    %v663 = vld [vmem:[#allocation5 + $0xc8] sm:$0xff]
    %v664 = vld [vmem:[#allocation5 + $0xd0] sm:$0xff]
    %v665 = vld [vmem:[#allocation5 + $0xd8] sm:$0xff]
    %v666 = vld [vmem:[#allocation5 + $0xe0] sm:$0xff]
    %v667 = vld [vmem:[#allocation5 + $0xe8] sm:$0xff]
    %v668 = vld [vmem:[#allocation5 + $0xf0] sm:$0xff]
    %v669 = vld [vmem:[#allocation5 + $0xf8] sm:$0xff]
    %v670 = vld [vmem:[#allocation5 + $0x100] sm:$0xff]
    %v671 = vld [vmem:[#allocation5 + $0x108] sm:$0xff]
    %v672 = vld [vmem:[#allocation5 + $0x110] sm:$0xff]
    %v673 = vld [vmem:[#allocation5 + $0x118] sm:$0xff]
    %v674 = vld [vmem:[#allocation5 + $0x120] sm:$0xff]
    %v675 = vld [vmem:[#allocation5 + $0x128] sm:$0xff]
    %v676 = vld [vmem:[#allocation5 + $0x130] sm:$0xff]
    %v677 = vld [vmem:[#allocation5 + $0x138] sm:$0xff]
    %v678 = vld [vmem:[#allocation5 + $0x140] sm:$0xff]
    %v679 = vld [vmem:[#allocation5 + $0x148] sm:$0xff]
    %v680 = vld [vmem:[#allocation5 + $0x150] sm:$0xff]
    %v681 = vld [vmem:[#allocation5 + $0x158] sm:$0xff]
    %v682 = vld [vmem:[#allocation5 + $0x160] sm:$0xff]
    %v683 = vld [vmem:[#allocation5 + $0x168] sm:$0xff]
    %v684 = vld [vmem:[#allocation5 + $0x170] sm:$0xff]
    %v685 = vld [vmem:[#allocation5 + $0x178] sm:$0xff]
    %v686 = vld [vmem:[#allocation5 + $0x180] sm:$0xff]
    %v687 = vld [vmem:[#allocation5 + $0x188] sm:$0xff]
    %v688 = vld [vmem:[#allocation5 + $0x190] sm:$0xff]
    %v689 = vld [vmem:[#allocation5 + $0x198] sm:$0xff]
    %v690 = vld [vmem:[#allocation5 + $0x1a0] sm:$0xff]
    %v691 = vld [vmem:[#allocation5 + $0x1a8] sm:$0xff]
    %v692 = vld [vmem:[#allocation5 + $0x1b0] sm:$0xff]
    %v693 = vld [vmem:[#allocation5 + $0x1b8] sm:$0xff]
    %v694 = vld [vmem:[#allocation5 + $0x1c0] sm:$0xff]
    %v695 = vld [vmem:[#allocation5 + $0x1c8] sm:$0xff]
    %v696 = vld [vmem:[#allocation5 + $0x1d0] sm:$0xff]
    %v697 = vld [vmem:[#allocation5 + $0x1d8] sm:$0xff]
    %v698 = vld [vmem:[#allocation5 + $0x1e0] sm:$0xff]
    %v699 = vld [vmem:[#allocation5 + $0x1e8] sm:$0xff]
    %v700 = vld [vmem:[#allocation5 + $0x1f0] sm:$0xff]
    %v701 = vld [vmem:[#allocation5 + $0x1f8] sm:$0xff]
    %v702 = vld [vmem:[%s6] sm:$0x3]
    %v704 = vperm.slane %v702, 0
    %v705 = vperm.slane %v702, 1
    %v772 = vunpack.c.l.b16 %v638
    %v773 = vunpack.c.h.b16 %v638
    %v774 = vunpack.c.l.b16 %v639
    %v775 = vunpack.c.h.b16 %v639
    %v776 = vunpack.c.l.b16 %v640
    %v777 = vunpack.c.h.b16 %v640
    %v778 = vunpack.c.l.b16 %v641
    %v779 = vunpack.c.h.b16 %v641
    %v780 = vunpack.c.l.b16 %v642
    %v781 = vunpack.c.h.b16 %v642
    %v782 = vunpack.c.l.b16 %v643
    %v783 = vunpack.c.h.b16 %v643
    %v784 = vunpack.c.l.b16 %v644
    %v785 = vunpack.c.h.b16 %v644
    %v786 = vunpack.c.l.b16 %v645
    %v787 = vunpack.c.h.b16 %v645
    %v788 = vunpack.c.l.b16 %v646
    %v789 = vunpack.c.h.b16 %v646
    %v790 = vunpack.c.l.b16 %v647
    %v791 = vunpack.c.h.b16 %v647
    %v792 = vunpack.c.l.b16 %v648
    %v793 = vunpack.c.h.b16 %v648
    %v794 = vunpack.c.l.b16 %v649
    %v795 = vunpack.c.h.b16 %v649
    %v796 = vunpack.c.l.b16 %v650
    %v797 = vunpack.c.h.b16 %v650
    %v798 = vunpack.c.l.b16 %v651
    %v799 = vunpack.c.h.b16 %v651
    %v800 = vunpack.c.l.b16 %v652
    %v801 = vunpack.c.h.b16 %v652
    %v802 = vunpack.c.l.b16 %v653
    %v803 = vunpack.c.h.b16 %v653
    %v804 = vunpack.c.l.b16 %v654
    %v805 = vunpack.c.h.b16 %v654
    %v806 = vunpack.c.l.b16 %v655
    %v807 = vunpack.c.h.b16 %v655
    %v808 = vunpack.c.l.b16 %v656
    %v809 = vunpack.c.h.b16 %v656
    %v810 = vunpack.c.l.b16 %v657
    %v811 = vunpack.c.h.b16 %v657
    %v812 = vunpack.c.l.b16 %v658
    %v813 = vunpack.c.h.b16 %v658
    %v814 = vunpack.c.l.b16 %v659
    %v815 = vunpack.c.h.b16 %v659
    %v816 = vunpack.c.l.b16 %v660
    %v817 = vunpack.c.h.b16 %v660
    %v818 = vunpack.c.l.b16 %v661
    %v819 = vunpack.c.h.b16 %v661
    %v820 = vunpack.c.l.b16 %v662
    %v821 = vunpack.c.h.b16 %v662
    %v822 = vunpack.c.l.b16 %v663
    %v823 = vunpack.c.h.b16 %v663
    %v824 = vunpack.c.l.b16 %v664
    %v825 = vunpack.c.h.b16 %v664
    %v826 = vunpack.c.l.b16 %v665
    %v827 = vunpack.c.h.b16 %v665
    %v828 = vunpack.c.l.b16 %v666
    %v829 = vunpack.c.h.b16 %v666
    %v830 = vunpack.c.l.b16 %v667
    %v831 = vunpack.c.h.b16 %v667
    %v832 = vunpack.c.l.b16 %v668
    %v833 = vunpack.c.h.b16 %v668
    %v834 = vunpack.c.l.b16 %v669
    %v835 = vunpack.c.h.b16 %v669
    %v836 = vunpack.c.l.b16 %v670
    %v837 = vunpack.c.h.b16 %v670
    %v838 = vunpack.c.l.b16 %v671
    %v839 = vunpack.c.h.b16 %v671
    %v840 = vunpack.c.l.b16 %v672
    %v841 = vunpack.c.h.b16 %v672
    %v842 = vunpack.c.l.b16 %v673
    %v843 = vunpack.c.h.b16 %v673
    %v844 = vunpack.c.l.b16 %v674
    %v845 = vunpack.c.h.b16 %v674
    %v846 = vunpack.c.l.b16 %v675
    %v847 = vunpack.c.h.b16 %v675
    %v848 = vunpack.c.l.b16 %v676
    %v849 = vunpack.c.h.b16 %v676
    %v850 = vunpack.c.l.b16 %v677
    %v851 = vunpack.c.h.b16 %v677
    %v852 = vunpack.c.l.b16 %v678
    %v853 = vunpack.c.h.b16 %v678
    %v854 = vunpack.c.l.b16 %v679
    %v855 = vunpack.c.h.b16 %v679
    %v856 = vunpack.c.l.b16 %v680
    %v857 = vunpack.c.h.b16 %v680
    %v858 = vunpack.c.l.b16 %v681
    %v859 = vunpack.c.h.b16 %v681
    %v860 = vunpack.c.l.b16 %v682
    %v861 = vunpack.c.h.b16 %v682
    %v862 = vunpack.c.l.b16 %v683
    %v863 = vunpack.c.h.b16 %v683
    %v864 = vunpack.c.l.b16 %v684
    %v865 = vunpack.c.h.b16 %v684
    %v866 = vunpack.c.l.b16 %v685
    %v867 = vunpack.c.h.b16 %v685
    %v868 = vunpack.c.l.b16 %v686
    %v869 = vunpack.c.h.b16 %v686
    %v870 = vunpack.c.l.b16 %v687
    %v871 = vunpack.c.h.b16 %v687
    %v872 = vunpack.c.l.b16 %v688
    %v873 = vunpack.c.h.b16 %v688
    %v874 = vunpack.c.l.b16 %v689
    %v875 = vunpack.c.h.b16 %v689
    %v876 = vunpack.c.l.b16 %v690
    %v877 = vunpack.c.h.b16 %v690
    %v878 = vunpack.c.l.b16 %v691
    %v879 = vunpack.c.h.b16 %v691
    %v880 = vunpack.c.l.b16 %v692
    %v881 = vunpack.c.h.b16 %v692
    %v882 = vunpack.c.l.b16 %v693
    %v883 = vunpack.c.h.b16 %v693
    %v884 = vunpack.c.l.b16 %v694
    %v885 = vunpack.c.h.b16 %v694
    %v886 = vunpack.c.l.b16 %v695
    %v887 = vunpack.c.h.b16 %v695
    %v888 = vunpack.c.l.b16 %v696
    %v889 = vunpack.c.h.b16 %v696
    %v890 = vunpack.c.l.b16 %v697
    %v891 = vunpack.c.h.b16 %v697
    %v892 = vunpack.c.l.b16 %v698
    %v893 = vunpack.c.h.b16 %v698
    %v894 = vunpack.c.l.b16 %v699
    %v895 = vunpack.c.h.b16 %v699
    %v896 = vunpack.c.l.b16 %v700
    %v897 = vunpack.c.h.b16 %v700
    %v898 = vunpack.c.l.b16 %v701
    %v899 = vunpack.c.h.b16 %v701
    %v900 = vpack.c.b16 %v774, %v772
    %v901 = vpack.c.b16 %v775, %v773
    %v902 = vpack.c.b16 %v778, %v776
    %v903 = vpack.c.b16 %v779, %v777
    %v904 = vpack.c.b16 %v782, %v780
    %v905 = vpack.c.b16 %v783, %v781
    %v906 = vpack.c.b16 %v786, %v784
    %v907 = vpack.c.b16 %v787, %v785
    %v908 = vpack.c.b16 %v790, %v788
    %v909 = vpack.c.b16 %v791, %v789
    %v910 = vpack.c.b16 %v794, %v792
    %v911 = vpack.c.b16 %v795, %v793
    %v912 = vpack.c.b16 %v798, %v796
    %v913 = vpack.c.b16 %v799, %v797
    %v914 = vpack.c.b16 %v802, %v800
    %v915 = vpack.c.b16 %v803, %v801
    %v916 = vpack.c.b16 %v806, %v804
    %v917 = vpack.c.b16 %v807, %v805
    %v918 = vpack.c.b16 %v810, %v808
    %v919 = vpack.c.b16 %v811, %v809
    %v920 = vpack.c.b16 %v814, %v812
    %v921 = vpack.c.b16 %v815, %v813
    %v922 = vpack.c.b16 %v818, %v816
    %v923 = vpack.c.b16 %v819, %v817
    %v924 = vpack.c.b16 %v822, %v820
    %v925 = vpack.c.b16 %v823, %v821
    %v926 = vpack.c.b16 %v826, %v824
    %v927 = vpack.c.b16 %v827, %v825
    %v928 = vpack.c.b16 %v830, %v828
    %v929 = vpack.c.b16 %v831, %v829
    %v930 = vpack.c.b16 %v834, %v832
    %v931 = vpack.c.b16 %v835, %v833
    %v932 = vpack.c.b16 %v838, %v836
    %v933 = vpack.c.b16 %v839, %v837
    %v934 = vpack.c.b16 %v842, %v840
    %v935 = vpack.c.b16 %v843, %v841
    %v936 = vpack.c.b16 %v846, %v844
    %v937 = vpack.c.b16 %v847, %v845
    %v938 = vpack.c.b16 %v850, %v848
    %v939 = vpack.c.b16 %v851, %v849
    %v940 = vpack.c.b16 %v854, %v852
    %v941 = vpack.c.b16 %v855, %v853
    %v942 = vpack.c.b16 %v858, %v856
    %v943 = vpack.c.b16 %v859, %v857
    %v944 = vpack.c.b16 %v862, %v860
    %v945 = vpack.c.b16 %v863, %v861
    %v946 = vpack.c.b16 %v866, %v864
    %v947 = vpack.c.b16 %v867, %v865
    %v948 = vpack.c.b16 %v870, %v868
    %v949 = vpack.c.b16 %v871, %v869
    %v950 = vpack.c.b16 %v874, %v872
    %v951 = vpack.c.b16 %v875, %v873
    %v952 = vpack.c.b16 %v878, %v876
    %v953 = vpack.c.b16 %v879, %v877
    %v954 = vpack.c.b16 %v882, %v880
    %v955 = vpack.c.b16 %v883, %v881
    %v956 = vpack.c.b16 %v886, %v884
    %v957 = vpack.c.b16 %v887, %v885
    %v958 = vpack.c.b16 %v890, %v888
    %v959 = vpack.c.b16 %v891, %v889
    %v960 = vpack.c.b16 %v894, %v892
    %v961 = vpack.c.b16 %v895, %v893
    %v962 = vpack.c.b16 %v898, %v896
    %v963 = vpack.c.b16 %v899, %v897
    %1028 = vmatpush.bf16.msra.mxu0 %v914
    %1029 = vmatpush.bf16.msra.mxu0 %v912
    %1030 = vmatpush.bf16.msra.mxu0 %v910
    %1031 = vmatpush.bf16.msra.mxu0 %v908
    %1032 = vmatpush.bf16.msra.mxu0 %v906
    %1033 = vmatpush.bf16.msra.mxu0 %v904
    %1034 = vmatpush.bf16.msra.mxu0 %v902
    %1035 = vmatpush.bf16.msra.mxu0 %v900
    %1036 = vmatmul.bf16.gmra.mxu0 %v634
    %v1037 = vpop.f32.mrf.mxu0
    %v1038 = vadd.f32 %v704, %v1037
    %v1039 = vpop.f32.mrf.mxu0
    %1040 = vdwg.mxu0
    %1041 = vmatpush.bf16.msra.mxu0 %v930
    %1042 = vmatpush.bf16.msra.mxu0 %v928
    %1043 = vmatpush.bf16.msra.mxu0 %v926
    %1044 = vmatpush.bf16.msra.mxu0 %v924
    %1045 = vmatpush.bf16.msra.mxu0 %v922
    %1046 = vmatpush.bf16.msra.mxu0 %v920
    %1047 = vmatpush.bf16.msra.mxu0 %v918
    %1048 = vmatpush.bf16.msra.mxu0 %v916
    %1049 = vmatmul.bf16.gmra.mxu0 %v635
    %v1050 = vpop.f32.mrf.mxu0
    %v1051 = vadd.f32 %v1038, %v1050
    %v1052 = vpop.f32.mrf.mxu0
    %1053 = vdwg.mxu0
    %1054 = vmatpush.bf16.msra.mxu0 %v946
    %1055 = vmatpush.bf16.msra.mxu0 %v944
    %1056 = vmatpush.bf16.msra.mxu0 %v942
    %1057 = vmatpush.bf16.msra.mxu0 %v940
    %1058 = vmatpush.bf16.msra.mxu0 %v938
    %1059 = vmatpush.bf16.msra.mxu0 %v936
    %1060 = vmatpush.bf16.msra.mxu0 %v934
    %1061 = vmatpush.bf16.msra.mxu0 %v932
    %1062 = vmatmul.bf16.gmra.mxu0 %v636
    %v1063 = vpop.f32.mrf.mxu0
    %v1064 = vadd.f32 %v1051, %v1063
    %v1065 = vpop.f32.mrf.mxu0
    %1066 = vdwg.mxu0
    %1067 = vmatpush.bf16.msra.mxu0 %v962
    %1068 = vmatpush.bf16.msra.mxu0 %v960
    %1069 = vmatpush.bf16.msra.mxu0 %v958
    %1070 = vmatpush.bf16.msra.mxu0 %v956
    %1071 = vmatpush.bf16.msra.mxu0 %v954
    %1072 = vmatpush.bf16.msra.mxu0 %v952
    %1073 = vmatpush.bf16.msra.mxu0 %v950
    %1074 = vmatpush.bf16.msra.mxu0 %v948
    %1075 = vmatmul.bf16.gmra.mxu0 %v637
    %v1076 = vpop.f32.mrf.mxu0
    %v1077 = vadd.f32 %v1064, %v1076
    %v1078 = vpop.f32.mrf.mxu0
    %1079 = vdwg.mxu0
    %1080 = vmatpush.bf16.msra.mxu0 %v915
    %1081 = vmatpush.bf16.msra.mxu0 %v913
    %1082 = vmatpush.bf16.msra.mxu0 %v911
    %1083 = vmatpush.bf16.msra.mxu0 %v909
    %1084 = vmatpush.bf16.msra.mxu0 %v907
    %1085 = vmatpush.bf16.msra.mxu0 %v905
    %1086 = vmatpush.bf16.msra.mxu0 %v903
    %1087 = vmatpush.bf16.msra.mxu0 %v901
    %1088 = vmatmul.bf16.gmra.mxu0 %v634
    %v1089 = vpop.f32.mrf.mxu0
    %v1090 = vadd.f32 %v705, %v1089
    %v1091 = vpop.f32.mrf.mxu0
    %1092 = vdwg.mxu0
    %1093 = vmatpush.bf16.msra.mxu0 %v931
    %1094 = vmatpush.bf16.msra.mxu0 %v929
    %1095 = vmatpush.bf16.msra.mxu0 %v927
    %1096 = vmatpush.bf16.msra.mxu0 %v925
    %1097 = vmatpush.bf16.msra.mxu0 %v923
    %1098 = vmatpush.bf16.msra.mxu0 %v921
    %1099 = vmatpush.bf16.msra.mxu0 %v919
    %1100 = vmatpush.bf16.msra.mxu0 %v917
    %1101 = vmatmul.bf16.gmra.mxu0 %v635
    %v1102 = vpop.f32.mrf.mxu0
    %v1103 = vadd.f32 %v1090, %v1102
    %v1104 = vpop.f32.mrf.mxu0
    %1105 = vdwg.mxu0
    %1106 = vmatpush.bf16.msra.mxu0 %v947
    %1107 = vmatpush.bf16.msra.mxu0 %v945
    %1108 = vmatpush.bf16.msra.mxu0 %v943
    %1109 = vmatpush.bf16.msra.mxu0 %v941
    %1110 = vmatpush.bf16.msra.mxu0 %v939
    %1111 = vmatpush.bf16.msra.mxu0 %v937
    %1112 = vmatpush.bf16.msra.mxu0 %v935
    %1113 = vmatpush.bf16.msra.mxu0 %v933
    %1114 = vmatmul.bf16.gmra.mxu0 %v636
    %v1115 = vpop.f32.mrf.mxu0
    %v1116 = vadd.f32 %v1103, %v1115
    %v1117 = vpop.f32.mrf.mxu0
    %1118 = vdwg.mxu0
    %1119 = vmatpush.bf16.msra.mxu0 %v963
    %1120 = vmatpush.bf16.msra.mxu0 %v961
    %1121 = vmatpush.bf16.msra.mxu0 %v959
    %1122 = vmatpush.bf16.msra.mxu0 %v957
    %1123 = vmatpush.bf16.msra.mxu0 %v955
    %1124 = vmatpush.bf16.msra.mxu0 %v953
    %1125 = vmatpush.bf16.msra.mxu0 %v951
    %1126 = vmatpush.bf16.msra.mxu0 %v949
    %1127 = vmatmul.bf16.gmra.mxu0 %v637
    %v1128 = vpop.f32.mrf.mxu0
    %v1129 = vadd.f32 %v1116, %v1128
    %v1130 = vpop.f32.mrf.mxu0
    %1131 = vdwg.mxu0
    %v1132 = vmax.f32 %v1077, 0.0
    %v1133 = vmax.f32 %v1129, 0.0
    %v1134 = vpack.c.bf16 %v1132, %v1132
    %v1135 = vpack.c.bf16 %v1133, %v1133
    %v1136 = vld [vmem:[%s7] sm:$0xf]
    %v1137 = vld [vmem:[%s7 + $0x4] sm:$0xf]
    %v1138 = vld [vmem:[%s7 + $0x8] sm:$0xf]
    %v1139 = vld [vmem:[%s7 + $0xc] sm:$0xf]
    %v1140 = vld [vmem:[%s7 + $0x10] sm:$0xf]
    %v1141 = vld [vmem:[%s7 + $0x14] sm:$0xf]
    %v1142 = vld [vmem:[%s7 + $0x18] sm:$0xf]
    %v1143 = vld [vmem:[%s7 + $0x1c] sm:$0xf]
    %v1144 = vld [vmem:[%s7 + $0x20] sm:$0xf]
    %v1145 = vld [vmem:[%s7 + $0x24] sm:$0xf]
    %v1146 = vld [vmem:[%s7 + $0x28] sm:$0xf]
    %v1147 = vld [vmem:[%s7 + $0x2c] sm:$0xf]
    %v1148 = vld [vmem:[%s7 + $0x30] sm:$0xf]
    %v1149 = vld [vmem:[%s7 + $0x34] sm:$0xf]
    %v1150 = vld [vmem:[%s7 + $0x38] sm:$0xf]
    %v1151 = vld [vmem:[%s7 + $0x3c] sm:$0xf]
    %v1152 = vld [vmem:[%s7 + $0x40] sm:$0xf]
    %v1153 = vld [vmem:[%s7 + $0x44] sm:$0xf]
    %v1154 = vld [vmem:[%s7 + $0x48] sm:$0xf]
    %v1155 = vld [vmem:[%s7 + $0x4c] sm:$0xf]
    %v1156 = vld [vmem:[%s7 + $0x50] sm:$0xf]
    %v1157 = vld [vmem:[%s7 + $0x54] sm:$0xf]
    %v1158 = vld [vmem:[%s7 + $0x58] sm:$0xf]
    %v1159 = vld [vmem:[%s7 + $0x5c] sm:$0xf]
    %v1160 = vld [vmem:[%s7 + $0x60] sm:$0xf]
    %v1161 = vld [vmem:[%s7 + $0x64] sm:$0xf]
    %v1162 = vld [vmem:[%s7 + $0x68] sm:$0xf]
    %v1163 = vld [vmem:[%s7 + $0x6c] sm:$0xf]
    %v1164 = vld [vmem:[%s7 + $0x70] sm:$0xf]
    %v1165 = vld [vmem:[%s7 + $0x74] sm:$0xf]
    %v1166 = vld [vmem:[%s7 + $0x78] sm:$0xf]
    %v1167 = vld [vmem:[%s7 + $0x7c] sm:$0xf]
    %v1168 = vld [vmem:[%s8] sm:$0x1]
    %v1170 = vperm.slane %v1168, 0
    %v1204 = vunpack.c.l.b16 %v1136
    %v1205 = vunpack.c.l.b16 %v1137
    %v1206 = vunpack.c.l.b16 %v1138
    %v1207 = vunpack.c.l.b16 %v1139
    %v1208 = vunpack.c.l.b16 %v1140
    %v1209 = vunpack.c.l.b16 %v1141
    %v1210 = vunpack.c.l.b16 %v1142
    %v1211 = vunpack.c.l.b16 %v1143
    %v1212 = vunpack.c.l.b16 %v1144
    %v1213 = vunpack.c.l.b16 %v1145
    %v1214 = vunpack.c.l.b16 %v1146
    %v1215 = vunpack.c.l.b16 %v1147
    %v1216 = vunpack.c.l.b16 %v1148
    %v1217 = vunpack.c.l.b16 %v1149
    %v1218 = vunpack.c.l.b16 %v1150
    %v1219 = vunpack.c.l.b16 %v1151
    %v1220 = vunpack.c.l.b16 %v1152
    %v1221 = vunpack.c.l.b16 %v1153
    %v1222 = vunpack.c.l.b16 %v1154
    %v1223 = vunpack.c.l.b16 %v1155
    %v1224 = vunpack.c.l.b16 %v1156
    %v1225 = vunpack.c.l.b16 %v1157
    %v1226 = vunpack.c.l.b16 %v1158
    %v1227 = vunpack.c.l.b16 %v1159
    %v1228 = vunpack.c.l.b16 %v1160
    %v1229 = vunpack.c.l.b16 %v1161
    %v1230 = vunpack.c.l.b16 %v1162
    %v1231 = vunpack.c.l.b16 %v1163
    %v1232 = vunpack.c.l.b16 %v1164
    %v1233 = vunpack.c.l.b16 %v1165
    %v1234 = vunpack.c.l.b16 %v1166
    %v1235 = vunpack.c.l.b16 %v1167
    %v1236 = vpack.c.b16 %v1205, %v1204
    %v1237 = vpack.c.b16 %v1207, %v1206
    %v1238 = vpack.c.b16 %v1209, %v1208
    %v1239 = vpack.c.b16 %v1211, %v1210
    %v1240 = vpack.c.b16 %v1213, %v1212
    %v1241 = vpack.c.b16 %v1215, %v1214
    %v1242 = vpack.c.b16 %v1217, %v1216
    %v1243 = vpack.c.b16 %v1219, %v1218
    %v1244 = vpack.c.b16 %v1221, %v1220
    %v1245 = vpack.c.b16 %v1223, %v1222
    %v1246 = vpack.c.b16 %v1225, %v1224
    %v1247 = vpack.c.b16 %v1227, %v1226
    %v1248 = vpack.c.b16 %v1229, %v1228
    %v1249 = vpack.c.b16 %v1231, %v1230
    %v1250 = vpack.c.b16 %v1233, %v1232
    %v1251 = vpack.c.b16 %v1235, %v1234
    %1268 = vmatpush.bf16.msra.mxu0 %v1243
    %1269 = vmatpush.bf16.msra.mxu0 %v1242
    %1270 = vmatpush.bf16.msra.mxu0 %v1241
    %1271 = vmatpush.bf16.msra.mxu0 %v1240
    %1272 = vmatpush.bf16.msra.mxu0 %v1239
    %1273 = vmatpush.bf16.msra.mxu0 %v1238
    %1274 = vmatpush.bf16.msra.mxu0 %v1237
    %1275 = vmatpush.bf16.msra.mxu0 %v1236
    %1276 = vmatmul.bf16.gmra.mxu0 %v1134
    %v1277 = vpop.f32.mrf.mxu0
    %v1278 = vadd.f32 %v1170, %v1277
    %v1279 = vpop.f32.mrf.mxu0
    %1280 = vdwg.mxu0
    %1281 = vmatpush.bf16.msra.mxu0 %v1251
    %1282 = vmatpush.bf16.msra.mxu0 %v1250
    %1283 = vmatpush.bf16.msra.mxu0 %v1249
    %1284 = vmatpush.bf16.msra.mxu0 %v1248
    %1285 = vmatpush.bf16.msra.mxu0 %v1247
    %1286 = vmatpush.bf16.msra.mxu0 %v1246
    %1287 = vmatpush.bf16.msra.mxu0 %v1245
    %1288 = vmatpush.bf16.msra.mxu0 %v1244
    %1289 = vmatmul.bf16.gmra.mxu0 %v1135
    %v1290 = vpop.f32.mrf.mxu0
    %v1291 = vadd.f32 %v1278, %v1290
    %v1292 = vpop.f32.mrf.mxu0
    %1293 = vdwg.mxu0
    %v1294 = vmax.f32 %v1291, 0.0
    %vm1295 = vcmask 130048
    %1296 = vst.msk [vmem:[#allocation7] sm:$0xff] %vm1295, %v1294
    // Predicated region
    $region46: #{network_light_recipe.1} parent=1 // pred_check
      _
    $region47: #{network_light_recipe.1} parent=1 // pred_check_branch
      %1298 = sbr.rel (0) target = $region49
    $region48: #{network_light_recipe.1} parent=1 // pred_region
      %1300 = vsyncadd [#allocation4], 0
      %s1302 = sshll.u32 [#allocation7], 4
      %s1303 = int_to_ptr.vmem [resolvable:$true] %s1302
      %s1304 = sshll.u32 %s9, 4
      %s1305 = int_to_ptr.hbm [resolvable:$true] %s1304
      %1307 = dma.vmem_to_hbm [thread:$0]  %s1303, 128, %s1305, [#allocation4]
    $region49: #{network_light_recipe.1} parent=1 // pred_fallthru
      _
    // Predicated region
    $region50: #{network_light_recipe.1} parent=1 // pred_check
      _
    $region51: #{network_light_recipe.1} parent=1 // pred_check_branch
      %1309 = sbr.rel (0) target = $region53
    $region52: #{network_light_recipe.1} parent=1 // pred_region
      %1311 = dma.done [#allocation4], 128
    $region53: #{network_light_recipe.1} parent=1 // pred_fallthru
      _
    %1312 = vsyncpa [#allocation3], 1
    %1313 = vsyncpa [#allocation6], 1
    %1314 = vsyncpa [#allocation4], 1

</llo_original>
